<compile_context>
chip_gen: v6e
topology: v6e:2x2x1
jax: 0.10.0
libtpu: 0.0.40
codegen_flags: <defaults>
</compile_context>

<pallas_src>
import functools

import jax
import jax.numpy as jnp
from jax.experimental import pallas as pl
from jax.experimental.pallas import tpu as pltpu


def _round_up(x, m):
    return ((x + m - 1) // m) * m


def _cdiv(a, b):
    return (a + b - 1) // b


def _stable_sigmoid(z):
    # Overflow-free sigmoid using exp(-|z|) only; exact division.
    ez = jnp.exp(-jnp.abs(z))
    num = jnp.where(z >= 0.0, 1.0, ez)
    return num / (1.0 + ez)


def _pack_factor(din, pack_lanes):
    # Edges packed per row so that P*Din is lane-aligned.  pack_lanes=256 can be
    # used on v6e/v7x (native 256x256 MXU); 128 is safe on every generation.
    for lanes in (pack_lanes, 128):
        if lanes % din == 0:
            return lanes // din
    return 1


def _block_diag(w, p):
    # (k, n) -> (p*k, p*n) block-diagonal with p copies of w on the diagonal.
    if p == 1:
        return w
    k, n = w.shape
    eye = jnp.eye(p, dtype=w.dtype)
    return (eye[:, None, :, None] * w[None, :, None, :]).reshape(p * k, p * n)


def _edge_tiling(n_edges, pack, edge_tile):
    rows = max(1, _cdiv(n_edges, pack))
    tm = max(16, min(max(1, edge_tile // pack), _round_up(rows, 16)))
    tm = _round_up(tm, 16)                 # bf16-friendly sublane multiple
    rows_pad = _round_up(rows, tm)
    return rows_pad, tm


def _gather_packed(h_bf16, idx, e_pad, rows_pad, pack, din):
    # Pad the *indices* (with node 0), gather bf16 once, reshape contiguously
    # into the packed (rows, pack*din) layout.
    idx = jnp.pad(idx, (0, e_pad - idx.shape[0]))
    g = jnp.take(h_bf16, idx, axis=0)      # (e_pad, din) bf16
    return g.reshape(rows_pad, pack * din)


# ---------------------------------------------------------------------------
# decoder_type == 'mlp'
# ---------------------------------------------------------------------------
def _lp_mlp_kernel(src_ref, dst_ref, w0s_ref, w0d_ref, b0_ref, w1_ref, b1_ref,
                   w2_ref, b2_ref, *rest, keep_scale):
    if keep_scale is None:
        (out_ref,) = rest
        m0_ref = m1_ref = None
    else:
        m0_ref, m1_ref, out_ref = rest

    src = src_ref[...]                     # (tm, P*Din)  bf16
    dst = dst_ref[...]                     # (tm, P*Din)  bf16

    # lin0: cat([src, dst]) @ W0 + b0 == src @ W0[:Din] + dst @ W0[Din:] + b0
    # (block-diagonal packed weights -> per-edge result, identical math).
    h = (jnp.dot(src, w0s_ref[...], preferred_element_type=jnp.float32)
         + jnp.dot(dst, w0d_ref[...], preferred_element_type=jnp.float32)
         + b0_ref[...])                    # (tm, P*2Din) f32
    h = jnp.maximum(h, 0.0)
    if m0_ref is not None:
        h = h * m0_ref[...].astype(jnp.float32) * keep_scale

    # lin1
    h = (jnp.dot(h.astype(jnp.bfloat16), w1_ref[...],
                 preferred_element_type=jnp.float32) + b1_ref[...])
    h = jnp.maximum(h, 0.0)
    if m1_ref is not None:
        h = h * m1_ref[...].astype(jnp.float32) * keep_scale

    # lin2 + sigmoid
    z = (jnp.dot(h.astype(jnp.bfloat16), w2_ref[...],
                 preferred_element_type=jnp.float32) + b2_ref[...])
    out_ref[...] = _stable_sigmoid(z)      # (tm, P*Dout) f32


def lp_decoder_mlp_forward(h, edge, w0, b0, w1, b1, w2, b2, *, dropout=0.0,
                           training=False, rng_key=None, edge_tile=8192,
                           pack_lanes=128):
    """sigmoid(MLP(cat([h[edge[0]], h[edge[1]]], -1))) — the 'mlp' decoder."""
    E = edge.shape[1]
    Din = h.shape[1]
    Din2 = w0.shape[0]
    assert Din2 == 2 * Din, "lin0 expects input width 2*in_channels"
    H = w1.shape[1]
    Dout = w2.shape[1]

    P = _pack_factor(Din, pack_lanes)
    rows_pad, tm = _edge_tiling(E, P, edge_tile)
    e_pad = rows_pad * P
    num_tiles = rows_pad // tm

    hb = h.astype(jnp.bfloat16)
    src = _gather_packed(hb, edge[0], e_pad, rows_pad, P, Din)
    dst = _gather_packed(hb, edge[1], e_pad, rows_pad, P, Din)

    # Concat folded into lin0; weights packed block-diagonally (P edges / row).
    w0s = _block_diag(w0[:Din], P).astype(jnp.bfloat16)     # (P*Din, P*2Din)
    w0d = _block_diag(w0[Din:], P).astype(jnp.bfloat16)     # (P*Din, P*2Din)
    w1b = _block_diag(w1, P).astype(jnp.bfloat16)           # (P*2Din, P*H)
    w2b = _block_diag(w2, P).astype(jnp.bfloat16)           # (P*H, P*Dout)
    b0r = jnp.tile(b0.astype(jnp.float32), P).reshape(1, P * Din2)
    b1r = jnp.tile(b1.astype(jnp.float32), P).reshape(1, P * H)
    b2r = jnp.tile(b2.astype(jnp.float32), P).reshape(1, P * Dout)

    tiled = lambda i: (i, 0)
    const = lambda i: (0, 0)
    in_specs = [
        pl.BlockSpec((tm, P * Din), tiled),        # src (packed)
        pl.BlockSpec((tm, P * Din), tiled),        # dst (packed)
        pl.BlockSpec((P * Din, P * Din2), const),  # W0 src half (block-diag)
        pl.BlockSpec((P * Din, P * Din2), const),  # W0 dst half (block-diag)
        pl.BlockSpec((1, P * Din2), const),        # b0
        pl.BlockSpec((P * Din2, P * H), const),    # W1 (block-diag)
        pl.BlockSpec((1, P * H), const),           # b1
        pl.BlockSpec((P * H, P * Dout), const),    # W2 (block-diag)
        pl.BlockSpec((1, P * Dout), const),        # b2
    ]
    args = [src, dst, w0s, w0d, b0r, w1b, b1r, w2b, b2r]

    apply_dropout = bool(training) and float(dropout) > 0.0
    keep_scale = None
    if apply_dropout:
        # Host-side Bernoulli {0,1} masks (bf16, exact); 1/(1-p) scale applied
        # in-kernel in f32.  (In-kernel pltpu PRNG has no CPU/interpret path.)
        keep_scale = 1.0 / (1.0 - float(dropout))
        if rng_key is None:
            rng_key = jax.random.PRNGKey(0)
        k0, k1 = jax.random.split(rng_key)
        m0 = jax.random.bernoulli(k0, 1.0 - float(dropout),
                                  (rows_pad, P * Din2)).astype(jnp.bfloat16)
        m1 = jax.random.bernoulli(k1, 1.0 - float(dropout),
                                  (rows_pad, P * H)).astype(jnp.bfloat16)
        in_specs += [pl.BlockSpec((tm, P * Din2), tiled),
                     pl.BlockSpec((tm, P * H), tiled)]
        args += [m0, m1]

    kernel = functools.partial(_lp_mlp_kernel, keep_scale=keep_scale)
    out = pl.pallas_call(
        kernel,
        out_shape=jax.ShapeDtypeStruct((rows_pad, P * Dout), jnp.float32),
        grid=(num_tiles,),
        in_specs=in_specs,
        out_specs=pl.BlockSpec((tm, P * Dout), tiled),
        compiler_params=pltpu.CompilerParams(
            dimension_semantics=("parallel",),
            vmem_limit_bytes=32 * 1024 * 1024),
    )(*args)
    return out.reshape(e_pad, Dout)[:E]


# ---------------------------------------------------------------------------
# decoder_type == 'inner'
# ---------------------------------------------------------------------------
def _lp_inner_kernel(src_ref, dst_ref, sel_ref, out_ref):
    s = src_ref[...].astype(jnp.float32)   # (tm, P*Din)
    d = dst_ref[...].astype(jnp.float32)
    # Per-edge reduction of each Din-wide segment via a 0/1 selector matmul
    # -> lane-denser (tm, P) output instead of a (te, 1) column.
    z = jnp.dot(s * d, sel_ref[...], preferred_element_type=jnp.float32)
    out_ref[...] = _stable_sigmoid(z)


def lp_decoder_inner_forward(h, edge, *, edge_tile=8192, pack_lanes=128):
    """sigmoid(sum(h[edge[0]] * h[edge[1]], -1)) — the 'inner' decoder."""
    E = edge.shape[1]
    Din = h.shape[1]
    P = _pack_factor(Din, pack_lanes)
    rows_pad, tm = _edge_tiling(E, P, edge_tile)
    e_pad = rows_pad * P
    num_tiles = rows_pad // tm

    hb = h.astype(jnp.bfloat16)
    src = _gather_packed(hb, edge[0], e_pad, rows_pad, P, Din)
    dst = _gather_packed(hb, edge[1], e_pad, rows_pad, P, Din)

    # sel[k, r] = 1 iff lane k belongs to packed edge r (exact 0/1 in f32).
    sel = (jnp.arange(P * Din)[:, None] // Din
           == jnp.arange(P)[None, :]).astype(jnp.float32)

    tiled = lambda i: (i, 0)
    const = lambda i: (0, 0)
    out = pl.pallas_call(
        _lp_inner_kernel,
        out_shape=jax.ShapeDtypeStruct((rows_pad, P), jnp.float32),
        grid=(num_tiles,),
        in_specs=[pl.BlockSpec((tm, P * Din), tiled),
                  pl.BlockSpec((tm, P * Din), tiled),
                  pl.BlockSpec((P * Din, P), const)],
        out_specs=pl.BlockSpec((tm, P), tiled),
        compiler_params=pltpu.CompilerParams(
            dimension_semantics=("parallel",),
            vmem_limit_bytes=32 * 1024 * 1024),
    )(src, dst, sel)
    return out.reshape(e_pad)[:E]


if __name__ == "__main__":
    # Small shapes consistent with the module: N nodes, Din features per node,
    # E edges; MLP decoder Linear(2*Din, 2*Din) -> Linear(2*Din, H) -> Linear(H, 1).
    N, Din, H, Dout = 64, 16, 32, 1
    E = 96
    dropout = 0.5

    key = jax.random.PRNGKey(0)
    kh, ke, k0, kb0, k1, kb1, k2, kb2, kdrop = jax.random.split(key, 9)
    h = jax.random.normal(kh, (N, Din), dtype=jnp.float32)
    edge = jax.random.randint(ke, (2, E), 0, N, dtype=jnp.int32)
    # Weights stored (in, out); scale ~ 1/sqrt(fan_in).
    w0 = jax.random.normal(k0, (2 * Din, 2 * Din), jnp.float32) * (1.0 / (2 * Din)) ** 0.5
    b0 = jax.random.normal(kb0, (2 * Din,), jnp.float32) * 0.1
    w1 = jax.random.normal(k1, (2 * Din, H), jnp.float32) * (1.0 / (2 * Din)) ** 0.5
    b1 = jax.random.normal(kb1, (H,), jnp.float32) * 0.1
    w2 = jax.random.normal(k2, (H, Dout), jnp.float32) * (1.0 / H) ** 0.5
    b2 = jax.random.normal(kb2, (Dout,), jnp.float32) * 0.1

    # ---- 'mlp' decoder, eval mode (no dropout) ----
    out_mlp = jax.block_until_ready(
        lp_decoder_mlp_forward(h, edge, w0, b0, w1, b1, w2, b2,
                               dropout=dropout, training=False))
    assert out_mlp.shape == (E, Dout)

    def ref_mlp(cast):
        hb_ = h.astype(cast)
        s = jnp.take(hb_, edge[0], axis=0)
        d = jnp.take(hb_, edge[1], axis=0)
        x = jnp.concatenate([s, d], axis=-1)
        x = jnp.dot(x, w0.astype(cast), preferred_element_type=jnp.float32) + b0
        x = jnp.maximum(x, 0.0)
        x = jnp.dot(x.astype(cast), w1.astype(cast),
                    preferred_element_type=jnp.float32) + b1
        x = jnp.maximum(x, 0.0)
        z = jnp.dot(x.astype(cast), w2.astype(cast),
                    preferred_element_type=jnp.float32) + b2
        return jax.nn.sigmoid(z)

    # Numerics-matched reference (same bf16 operand cast, f32 accumulation).
    assert jnp.allclose(out_mlp, ref_mlp(jnp.bfloat16), atol=2e-3, rtol=2e-3)
    # Loose sanity check against a pure-f32 reference.
    assert jnp.allclose(out_mlp, ref_mlp(jnp.float32), atol=5e-2, rtol=5e-2)

    # ---- 'mlp' decoder, training mode (host-side dropout masks) ----
    out_train = jax.block_until_ready(
        lp_decoder_mlp_forward(h, edge, w0, b0, w1, b1, w2, b2,
                               dropout=dropout, training=True, rng_key=kdrop))
    assert out_train.shape == (E, Dout)
    assert bool(jnp.all(jnp.isfinite(out_train)))
    assert bool(jnp.all((out_train >= 0.0) & (out_train <= 1.0)))

    # ---- 'inner' decoder ----
    out_inner = jax.block_until_ready(lp_decoder_inner_forward(h, edge))
    assert out_inner.shape == (E,)
    hb32 = h.astype(jnp.bfloat16).astype(jnp.float32)
    ref_inner_matched = jax.nn.sigmoid(
        jnp.sum(jnp.take(hb32, edge[0], axis=0) * jnp.take(hb32, edge[1], axis=0),
                axis=-1))
    ref_inner_f32 = jax.nn.sigmoid(
        jnp.sum(jnp.take(h, edge[0], axis=0) * jnp.take(h, edge[1], axis=0),
                axis=-1))
    assert jnp.allclose(out_inner, ref_inner_matched, atol=2e-3, rtol=2e-3)
    assert jnp.allclose(out_inner, ref_inner_f32, atol=5e-2, rtol=5e-2)

    print("KERNEL_OK")
</pallas_src>

<mosaic_0001>
module attributes {stable_mosaic.version = 11 : i64} {
  func.func @_lp_mlp_kernel(%arg0: i32, %arg1: memref<16x128xbf16, #tpu.memory_space<vmem>>, %arg2: memref<16x128xbf16, #tpu.memory_space<vmem>>, %arg3: memref<128x256xbf16, #tpu.memory_space<vmem>>, %arg4: memref<128x256xbf16, #tpu.memory_space<vmem>>, %arg5: memref<1x256xf32, #tpu.memory_space<vmem>>, %arg6: memref<256x256xbf16, #tpu.memory_space<vmem>>, %arg7: memref<1x256xf32, #tpu.memory_space<vmem>>, %arg8: memref<256x8xbf16, #tpu.memory_space<vmem>>, %arg9: memref<1x8xf32, #tpu.memory_space<vmem>>, %arg10: memref<16x8xf32, #tpu.memory_space<vmem>>) attributes {dimension_semantics = [#tpu.dimension_semantics<parallel>], iteration_bounds = array<i64: 1>, scalar_prefetch = 0 : i64, scratch_operands = 0 : i64, tpu.core_type = #tpu.core_type<tc>, window_params = [{transform_indices = @transform_0, window_bounds = array<i64: 16, 128>}, {transform_indices = @transform_1, window_bounds = array<i64: 16, 128>}, {pipeline_mode = #tpu.pipeline_mode<synchronous>, transform_indices = @transform_2, window_bounds = array<i64: 128, 256>}, {pipeline_mode = #tpu.pipeline_mode<synchronous>, transform_indices = @transform_3, window_bounds = array<i64: 128, 256>}, {pipeline_mode = #tpu.pipeline_mode<synchronous>, transform_indices = @transform_4, window_bounds = array<i64: 1, 256>}, {pipeline_mode = #tpu.pipeline_mode<synchronous>, transform_indices = @transform_5, window_bounds = array<i64: 256, 256>}, {pipeline_mode = #tpu.pipeline_mode<synchronous>, transform_indices = @transform_6, window_bounds = array<i64: 1, 256>}, {pipeline_mode = #tpu.pipeline_mode<synchronous>, transform_indices = @transform_7, window_bounds = array<i64: 256, 8>}, {pipeline_mode = #tpu.pipeline_mode<synchronous>, transform_indices = @transform_8, window_bounds = array<i64: 1, 8>}, {transform_indices = @transform_9, window_bounds = array<i64: 16, 8>}]} {
    %c0 = arith.constant 0 : index
    %c0_0 = arith.constant 0 : index
    %0 = vector.load %arg1[%c0, %c0_0] : memref<16x128xbf16, #tpu.memory_space<vmem>>, vector<16x128xbf16>
    %c0_1 = arith.constant 0 : index
    %c0_2 = arith.constant 0 : index
    %1 = vector.load %arg2[%c0_1, %c0_2] : memref<16x128xbf16, #tpu.memory_space<vmem>>, vector<16x128xbf16>
    %c0_3 = arith.constant 0 : index
    %c0_4 = arith.constant 0 : index
    %2 = vector.load %arg3[%c0_3, %c0_4] : memref<128x256xbf16, #tpu.memory_space<vmem>>, vector<128x256xbf16>
    %cst = arith.constant dense<0.000000e+00> : vector<16x256xf32>
    %3 = tpu.matmul %0, %2, %cst {dimension_numbers = #tpu.dot_dimension_numbers<[1], [0], [0], [1], [0, 0, 1, 1], [], []>} : vector<16x128xbf16>, vector<128x256xbf16>, vector<16x256xf32> -> vector<16x256xf32>
    %c0_5 = arith.constant 0 : index
    %c0_6 = arith.constant 0 : index
    %4 = vector.load %arg4[%c0_5, %c0_6] : memref<128x256xbf16, #tpu.memory_space<vmem>>, vector<128x256xbf16>
    %cst_7 = arith.constant dense<0.000000e+00> : vector<16x256xf32>
    %5 = tpu.matmul %1, %4, %cst_7 {dimension_numbers = #tpu.dot_dimension_numbers<[1], [0], [0], [1], [0, 0, 1, 1], [], []>} : vector<16x128xbf16>, vector<128x256xbf16>, vector<16x256xf32> -> vector<16x256xf32>
    %6 = arith.addf %3, %5 : vector<16x256xf32>
    %c0_8 = arith.constant 0 : index
    %c0_9 = arith.constant 0 : index
    %7 = vector.load %arg5[%c0_8, %c0_9] : memref<1x256xf32, #tpu.memory_space<vmem>>, vector<1x256xf32>
    %8 = vector.broadcast %7 : vector<1x256xf32> to vector<16x256xf32>
    %9 = arith.addf %6, %8 : vector<16x256xf32>
    %cst_10 = arith.constant 0.000000e+00 : f32
    %10 = vector.broadcast %cst_10 : f32 to vector<16x256xf32>
    %11 = arith.maximumf %9, %10 : vector<16x256xf32>
    %12 = arith.truncf %11 : vector<16x256xf32> to vector<16x256xbf16>
    %c0_11 = arith.constant 0 : index
    %c0_12 = arith.constant 0 : index
    %13 = vector.load %arg6[%c0_11, %c0_12] : memref<256x256xbf16, #tpu.memory_space<vmem>>, vector<256x256xbf16>
    %cst_13 = arith.constant dense<0.000000e+00> : vector<16x256xf32>
    %14 = tpu.matmul %12, %13, %cst_13 {dimension_numbers = #tpu.dot_dimension_numbers<[1], [0], [0], [1], [0, 0, 1, 1], [], []>} : vector<16x256xbf16>, vector<256x256xbf16>, vector<16x256xf32> -> vector<16x256xf32>
    %c0_14 = arith.constant 0 : index
    %c0_15 = arith.constant 0 : index
    %15 = vector.load %arg7[%c0_14, %c0_15] : memref<1x256xf32, #tpu.memory_space<vmem>>, vector<1x256xf32>
    %16 = vector.broadcast %15 : vector<1x256xf32> to vector<16x256xf32>
    %17 = arith.addf %14, %16 : vector<16x256xf32>
    %cst_16 = arith.constant 0.000000e+00 : f32
    %18 = vector.broadcast %cst_16 : f32 to vector<16x256xf32>
    %19 = arith.maximumf %17, %18 : vector<16x256xf32>
    %20 = arith.truncf %19 : vector<16x256xf32> to vector<16x256xbf16>
    %c0_17 = arith.constant 0 : index
    %c0_18 = arith.constant 0 : index
    %21 = vector.load %arg8[%c0_17, %c0_18] : memref<256x8xbf16, #tpu.memory_space<vmem>>, vector<256x8xbf16>
    %cst_19 = arith.constant dense<0.000000e+00> : vector<16x8xf32>
    %22 = tpu.matmul %20, %21, %cst_19 {dimension_numbers = #tpu.dot_dimension_numbers<[1], [0], [0], [1], [0, 0, 1, 1], [], []>} : vector<16x256xbf16>, vector<256x8xbf16>, vector<16x8xf32> -> vector<16x8xf32>
    %c0_20 = arith.constant 0 : index
    %c0_21 = arith.constant 0 : index
    %23 = vector.load %arg9[%c0_20, %c0_21] : memref<1x8xf32, #tpu.memory_space<vmem>>, vector<1x8xf32>
    %24 = vector.broadcast %23 : vector<1x8xf32> to vector<16x8xf32>
    %25 = arith.addf %22, %24 : vector<16x8xf32>
    %26 = math.absf %25 : vector<16x8xf32>
    %cst_22 = arith.constant 0.000000e+00 : f32
    %27 = vector.broadcast %cst_22 : f32 to vector<16x8xf32>
    %28 = arith.subf %27, %26 : vector<16x8xf32>
    %29 = math.exp %28 : vector<16x8xf32>
    %cst_23 = arith.constant 0.000000e+00 : f32
    %30 = vector.broadcast %cst_23 : f32 to vector<16x8xf32>
    %31 = arith.cmpf oge, %25, %30 : vector<16x8xf32>
    %cst_24 = arith.constant 1.000000e+00 : f32
    %32 = vector.broadcast %cst_24 : f32 to vector<16x8xf32>
    %33 = arith.select %31, %32, %29 : vector<16x8xi1>, vector<16x8xf32>
    %cst_25 = arith.constant 1.000000e+00 : f32
    %34 = vector.broadcast %cst_25 : f32 to vector<16x8xf32>
    %35 = arith.addf %34, %29 : vector<16x8xf32>
    %36 = arith.divf %33, %35 : vector<16x8xf32>
    %c0_26 = arith.constant 0 : index
    %c0_27 = arith.constant 0 : index
    %37 = vector.load %arg10[%c0_26, %c0_27] : memref<16x8xf32, #tpu.memory_space<vmem>>, vector<16x8xf32>
    tpu.vector_store %arg10[%c0_26, %c0_27], %36 {strides = array<i32>} : memref<16x8xf32, #tpu.memory_space<vmem>>, vector<16x8xf32>,
    return
  }
  func.func @transform_0(%arg0: i32) -> (i32, i32) {
    %c0_i32 = arith.constant 0 : i32
    %c0_i32_0 = arith.constant 0 : i32
    return %arg0, %c0_i32 : i32, i32
  }
  func.func @transform_1(%arg0: i32) -> (i32, i32) {
    %c0_i32 = arith.constant 0 : i32
    %c0_i32_0 = arith.constant 0 : i32
    return %arg0, %c0_i32 : i32, i32
  }
  func.func @transform_2(%arg0: i32) -> (i32, i32) {
    %c0_i32 = arith.constant 0 : i32
    %c0_i32_0 = arith.constant 0 : i32
    %c0_i32_1 = arith.constant 0 : i32
    return %c0_i32, %c0_i32_0 : i32, i32
  }
  func.func @transform_3(%arg0: i32) -> (i32, i32) {
    %c0_i32 = arith.constant 0 : i32
    %c0_i32_0 = arith.constant 0 : i32
    %c0_i32_1 = arith.constant 0 : i32
    return %c0_i32, %c0_i32_0 : i32, i32
  }
  func.func @transform_4(%arg0: i32) -> (i32, i32) {
    %c0_i32 = arith.constant 0 : i32
    %c0_i32_0 = arith.constant 0 : i32
    %c0_i32_1 = arith.constant 0 : i32
    return %c0_i32, %c0_i32_0 : i32, i32
  }
  func.func @transform_5(%arg0: i32) -> (i32, i32) {
    %c0_i32 = arith.constant 0 : i32
    %c0_i32_0 = arith.constant 0 : i32
    %c0_i32_1 = arith.constant 0 : i32
    return %c0_i32, %c0_i32_0 : i32, i32
  }
  func.func @transform_6(%arg0: i32) -> (i32, i32) {
    %c0_i32 = arith.constant 0 : i32
    %c0_i32_0 = arith.constant 0 : i32
    %c0_i32_1 = arith.constant 0 : i32
    return %c0_i32, %c0_i32_0 : i32, i32
  }
  func.func @transform_7(%arg0: i32) -> (i32, i32) {
    %c0_i32 = arith.constant 0 : i32
    %c0_i32_0 = arith.constant 0 : i32
    %c0_i32_1 = arith.constant 0 : i32
    return %c0_i32, %c0_i32_0 : i32, i32
  }
  func.func @transform_8(%arg0: i32) -> (i32, i32) {
    %c0_i32 = arith.constant 0 : i32
    %c0_i32_0 = arith.constant 0 : i32
    %c0_i32_1 = arith.constant 0 : i32
    return %c0_i32, %c0_i32_0 : i32, i32
  }
  func.func @transform_9(%arg0: i32) -> (i32, i32) {
    %c0_i32 = arith.constant 0 : i32
    %c0_i32_0 = arith.constant 0 : i32
    return %arg0, %c0_i32 : i32, i32
  }
}

</mosaic_0001>

<llo_original>
// kernel: tpu_custom_call.1
$region0: #{tpu_custom_call.1}
  #allocation0 [shape = 'u32[]', space=smem, size = 0x4, offset = 0x4, fixed_abs, tag = 'smem constant byte address 0x4 - core index']
  #allocation1 [shape = 'u32[144,128]{1,0:T(1,128)}', space=vmem, size = 0x12000, scoped, tag = 'internal scratch']
  %s0 = inlined_call_operand.vmem [shape: bf16[16,128], index: 0, kind: input, shape index: {}]
  %s1 = inlined_call_operand.hbm [shape: bf16[16,128], index: 1, kind: input, shape index: {}]
  %s2 = inlined_call_operand.vmem [shape: bf16[128,256], index: 2, kind: input, shape index: {}]
  %s3 = inlined_call_operand.hbm [shape: bf16[128,256], index: 3, kind: input, shape index: {}]
  %s4 = inlined_call_operand.vmem [shape: f32[1,256], index: 4, kind: input, shape index: {}]
  %s5 = inlined_call_operand.hbm [shape: bf16[256,256], index: 5, kind: input, shape index: {}]
  %s6 = inlined_call_operand.vmem [shape: f32[1,256], index: 6, kind: input, shape index: {}]
  %s7 = inlined_call_operand.vmem [shape: bf16[256,8], index: 7, kind: input, shape index: {}]
  %s8 = inlined_call_operand.vmem [shape: f32[1,8], index: 8, kind: input, shape index: {}]
  %s9 = inlined_call_operand.vmem [shape: f32[16,8], index: 9, kind: output, shape index: {}]
  %s10 = sld [smem:[#allocation0]]
  $region58: #{tpu_custom_call.1} parent=0
    _
  %s12 = ssub.s32 1, %s10
  %s13 = scalar_select 0, %s12, %s10
  $region1: #{tpu_custom_call.1} parent=0
    #allocation2 [shape = 'u8[4096]{0}', space=vmem, size = 0x1000, scoped, tag = 'input window, operand 1, single buffered']
    #allocation3 [shape = 's32[1]{0}', space=sflag, size = 0x4, scoped, tag = 'scoped memory for tpu_custom_call.1']
    #allocation4 [shape = 'u8[65536]{0}', space=vmem, size = 0x10000, scoped, tag = 'input window, operand 3, single buffered']
    #allocation5 [shape = 's32[1]{0}', space=sflag, size = 0x4, scoped, tag = 'scoped memory for tpu_custom_call.1']
    #allocation6 [shape = 'u8[131072]{0}', space=vmem, size = 0x20000, scoped, tag = 'input window, operand 5, single buffered']
    %14 = vsyncpa [#allocation3], 0
    %15 = vsyncpa [#allocation5], 0
    // Predicated region
    $region2: #{tpu_custom_call.1} parent=1 // pred_check
      _
    $region3: #{tpu_custom_call.1} parent=1 // pred_check_branch
      %17 = sbr.rel (0) target = $region5
    $region4: #{tpu_custom_call.1} parent=1 // pred_region
      _
    $region5: #{tpu_custom_call.1} parent=1 // pred_fallthru
      _
    // Predicated region
    $region6: #{tpu_custom_call.1} parent=1 // pred_check
      _
    $region7: #{tpu_custom_call.1} parent=1 // pred_check_branch
      %19 = sbr.rel (0) target = $region9
    $region8: #{tpu_custom_call.1} parent=1 // pred_region
      %s21 = ssub.s32 128, 128
      %22 = vsyncadd [#allocation3], %s21
      %s23 = sshll.u32 [#allocation2], 4
      %s24 = int_to_ptr.vmem [resolvable:$true] %s23
      %29 = dma.hbm_to_vmem [thread:$0]  %s1, 128, %s24, [#allocation3], 64, 64, 4
    $region9: #{tpu_custom_call.1} parent=1 // pred_fallthru
      _
    // Predicated region
    $region10: #{tpu_custom_call.1} parent=1 // pred_check
      _
    $region11: #{tpu_custom_call.1} parent=1 // pred_check_branch
      %31 = sbr.rel (0) target = $region13
    $region12: #{tpu_custom_call.1} parent=1 // pred_region
      _
    $region13: #{tpu_custom_call.1} parent=1 // pred_fallthru
      _
    // Predicated region
    $region14: #{tpu_custom_call.1} parent=1 // pred_check
      _
    $region15: #{tpu_custom_call.1} parent=1 // pred_check_branch
      %33 = sbr.rel (0) target = $region17
    $region16: #{tpu_custom_call.1} parent=1 // pred_region
      %s35 = ssub.s32 2048, 2048
      %36 = vsyncadd [#allocation5], %s35
      %s37 = sshll.u32 [#allocation4], 4
      %s38 = int_to_ptr.vmem [resolvable:$true] %s37
      %43 = dma.hbm_to_vmem [thread:$0]  %s3, 2048, %s38, [#allocation5], 128, 128, 8
    $region17: #{tpu_custom_call.1} parent=1 // pred_fallthru
      _
    // Predicated region
    $region18: #{tpu_custom_call.1} parent=1 // pred_check
      _
    $region19: #{tpu_custom_call.1} parent=1 // pred_check_branch
      %45 = sbr.rel (0) target = $region21
    $region20: #{tpu_custom_call.1} parent=1 // pred_region
      _
    $region21: #{tpu_custom_call.1} parent=1 // pred_fallthru
      _
    // Predicated region
    $region22: #{tpu_custom_call.1} parent=1 // pred_check
      _
    $region23: #{tpu_custom_call.1} parent=1 // pred_check_branch
      %47 = sbr.rel (0) target = $region25
    $region24: #{tpu_custom_call.1} parent=1 // pred_region
      %s49 = ssub.s32 4096, 4096
      %50 = vsyncadd [#allocation5], %s49
      %s51 = sshll.u32 [#allocation6], 4
      %s52 = int_to_ptr.vmem [resolvable:$true] %s51
      %57 = dma.hbm_to_vmem [thread:$0]  %s5, 4096, %s52, [#allocation5], 128, 128, 8
    $region25: #{tpu_custom_call.1} parent=1 // pred_fallthru
      _
    // Predicated region
    $region26: #{tpu_custom_call.1} parent=1 // pred_check
      _
    $region27: #{tpu_custom_call.1} parent=1 // pred_check_branch
      %59 = sbr.rel (0) target = $region29
    $region28: #{tpu_custom_call.1} parent=1 // pred_region
      _
    $region29: #{tpu_custom_call.1} parent=1 // pred_fallthru
      _
    // Predicated region
    $region30: #{tpu_custom_call.1} parent=1 // pred_check
      _
    $region31: #{tpu_custom_call.1} parent=1 // pred_check_branch
      %61 = sbr.rel (0) target = $region33
    $region32: #{tpu_custom_call.1} parent=1 // pred_region
      _
    $region33: #{tpu_custom_call.1} parent=1 // pred_fallthru
      _
    // Predicated region
    $region34: #{tpu_custom_call.1} parent=1 // pred_check
      _
    $region35: #{tpu_custom_call.1} parent=1 // pred_check_branch
      %63 = sbr.rel (0) target = $region37
    $region36: #{tpu_custom_call.1} parent=1 // pred_region
      _
    $region37: #{tpu_custom_call.1} parent=1 // pred_fallthru
      _
    // Predicated region
    $region38: #{tpu_custom_call.1} parent=1 // pred_check
      _
    $region39: #{tpu_custom_call.1} parent=1 // pred_check_branch
      %65 = sbr.rel (0) target = $region41
    $region40: #{tpu_custom_call.1} parent=1 // pred_region
      %66 = dma.done [#allocation3], 128
    $region41: #{tpu_custom_call.1} parent=1 // pred_fallthru
      _
    // Predicated region
    $region42: #{tpu_custom_call.1} parent=1 // pred_check
      _
    $region43: #{tpu_custom_call.1} parent=1 // pred_check_branch
      %68 = sbr.rel (0) target = $region45
    $region44: #{tpu_custom_call.1} parent=1 // pred_region
      %69 = dma.done [#allocation5], 2048
    $region45: #{tpu_custom_call.1} parent=1 // pred_fallthru
      _
    // Predicated region
    $region46: #{tpu_custom_call.1} parent=1 // pred_check
      _
    $region47: #{tpu_custom_call.1} parent=1 // pred_check_branch
      %71 = sbr.rel (0) target = $region49
    $region48: #{tpu_custom_call.1} parent=1 // pred_region
      %72 = dma.done [#allocation5], 4096
    $region49: #{tpu_custom_call.1} parent=1 // pred_fallthru
      _
    %v74 = vld [vmem:[%s0] sm:$0xf]
    %v75 = vld [vmem:[%s0 + $0x4] sm:$0xf]
    %v76 = vld [vmem:[#allocation2] sm:$0xf]
    %v77 = vld [vmem:[#allocation2 + $0x4] sm:$0xf]
    %v78 = vld [vmem:[%s2] sm:$0xff]
    %v79 = vld [vmem:[%s2 + $0x8] sm:$0xff]
    %v80 = vld [vmem:[%s2 + $0x10] sm:$0xff]
    %v81 = vld [vmem:[%s2 + $0x18] sm:$0xff]
    %v82 = vld [vmem:[%s2 + $0x20] sm:$0xff]
    %v83 = vld [vmem:[%s2 + $0x28] sm:$0xff]
    %v84 = vld [vmem:[%s2 + $0x30] sm:$0xff]
    %v85 = vld [vmem:[%s2 + $0x38] sm:$0xff]
    %v86 = vld [vmem:[%s2 + $0x40] sm:$0xff]
    %v87 = vld [vmem:[%s2 + $0x48] sm:$0xff]
    %v88 = vld [vmem:[%s2 + $0x50] sm:$0xff]
    %v89 = vld [vmem:[%s2 + $0x58] sm:$0xff]
    %v90 = vld [vmem:[%s2 + $0x60] sm:$0xff]
    %v91 = vld [vmem:[%s2 + $0x68] sm:$0xff]
    %v92 = vld [vmem:[%s2 + $0x70] sm:$0xff]
    %v93 = vld [vmem:[%s2 + $0x78] sm:$0xff]
    %v94 = vld [vmem:[#allocation4] sm:$0xff]
    %v95 = vld [vmem:[#allocation4 + $0x8] sm:$0xff]
    %v96 = vld [vmem:[#allocation4 + $0x10] sm:$0xff]
    %v97 = vld [vmem:[#allocation4 + $0x18] sm:$0xff]
    %v98 = vld [vmem:[#allocation4 + $0x20] sm:$0xff]
    %v99 = vld [vmem:[#allocation4 + $0x28] sm:$0xff]
    %v100 = vld [vmem:[#allocation4 + $0x30] sm:$0xff]
    %v101 = vld [vmem:[#allocation4 + $0x38] sm:$0xff]
    %v102 = vld [vmem:[#allocation4 + $0x40] sm:$0xff]
    %v103 = vld [vmem:[#allocation4 + $0x48] sm:$0xff]
    %v104 = vld [vmem:[#allocation4 + $0x50] sm:$0xff]
    %v105 = vld [vmem:[#allocation4 + $0x58] sm:$0xff]
    %v106 = vld [vmem:[#allocation4 + $0x60] sm:$0xff]
    %v107 = vld [vmem:[#allocation4 + $0x68] sm:$0xff]
    %v108 = vld [vmem:[#allocation4 + $0x70] sm:$0xff]
    %v109 = vld [vmem:[#allocation4 + $0x78] sm:$0xff]
    %v112 = vunpack.c.l.b16 %v76
    %v113 = vunpack.c.l.b16 %v77
    %v114 = vpack.c.b16 %v113, %v112
    %v132 = vunpack.c.l.b16 %v94
    %v133 = vunpack.c.h.b16 %v94
    %v134 = vunpack.c.l.b16 %v95
    %v135 = vunpack.c.h.b16 %v95
    %v136 = vunpack.c.l.b16 %v96
    %v137 = vunpack.c.h.b16 %v96
    %v138 = vunpack.c.l.b16 %v97
    %v139 = vunpack.c.h.b16 %v97
    %v140 = vunpack.c.l.b16 %v98
    %v141 = vunpack.c.h.b16 %v98
    %v142 = vunpack.c.l.b16 %v99
    %v143 = vunpack.c.h.b16 %v99
    %v144 = vunpack.c.l.b16 %v100
    %v145 = vunpack.c.h.b16 %v100
    %v146 = vunpack.c.l.b16 %v101
    %v147 = vunpack.c.h.b16 %v101
    %v148 = vunpack.c.l.b16 %v102
    %v149 = vunpack.c.h.b16 %v102
    %v150 = vunpack.c.l.b16 %v103
    %v151 = vunpack.c.h.b16 %v103
    %v152 = vunpack.c.l.b16 %v104
    %v153 = vunpack.c.h.b16 %v104
    %v154 = vunpack.c.l.b16 %v105
    %v155 = vunpack.c.h.b16 %v105
    %v156 = vunpack.c.l.b16 %v106
    %v157 = vunpack.c.h.b16 %v106
    %v158 = vunpack.c.l.b16 %v107
    %v159 = vunpack.c.h.b16 %v107
    %v160 = vunpack.c.l.b16 %v108
    %v161 = vunpack.c.h.b16 %v108
    %v162 = vunpack.c.l.b16 %v109
    %v163 = vunpack.c.h.b16 %v109
    %v164 = vpack.c.b16 %v134, %v132
    %v165 = vpack.c.b16 %v135, %v133
    %v166 = vpack.c.b16 %v138, %v136
    %v167 = vpack.c.b16 %v139, %v137
    %v168 = vpack.c.b16 %v142, %v140
    %v169 = vpack.c.b16 %v143, %v141
    %v170 = vpack.c.b16 %v146, %v144
    %v171 = vpack.c.b16 %v147, %v145
    %v172 = vpack.c.b16 %v150, %v148
    %v173 = vpack.c.b16 %v151, %v149
    %v174 = vpack.c.b16 %v154, %v152
    %v175 = vpack.c.b16 %v155, %v153
    %v176 = vpack.c.b16 %v158, %v156
    %v177 = vpack.c.b16 %v159, %v157
    %v178 = vpack.c.b16 %v162, %v160
    %v179 = vpack.c.b16 %v163, %v161
    %196 = vmatprep.subr.bf16.mxu0 %v179
    %197 = vmatpush1.bf16.msra.mxu0 %v178
    %198 = vmatprep.subr.bf16.mxu0 %v177
    %199 = vmatpush1.bf16.msra.mxu0 %v176
    %200 = vmatprep.subr.bf16.mxu0 %v175
    %201 = vmatpush1.bf16.msra.mxu0 %v174
    %202 = vmatprep.subr.bf16.mxu0 %v173
    %203 = vmatpush1.bf16.msra.mxu0 %v172
    %204 = vmatprep.subr.bf16.mxu0 %v171
    %205 = vmatpush1.bf16.msra.mxu0 %v170
    %206 = vmatprep.subr.bf16.mxu0 %v169
    %207 = vmatpush1.bf16.msra.mxu0 %v168
    %208 = vmatprep.subr.bf16.mxu0 %v167
    %209 = vmatpush1.bf16.msra.mxu0 %v166
    %210 = vmatprep.subr.bf16.mxu0 %v165
    %211 = vmatpush1.bf16.msra.mxu0 %v164
    %212 = vmatprep.subr.bf16.mxu0 0
    %213 = vmatpush2.bf16.msra.mxu0 0
    %214 = vmatprep.subr.bf16.mxu0 0
    %215 = vmatpush2.bf16.msra.mxu0 0
    %216 = vmatprep.subr.bf16.mxu0 0
    %217 = vmatpush2.bf16.msra.mxu0 0
    %218 = vmatprep.subr.bf16.mxu0 0
    %219 = vmatpush2.bf16.msra.mxu0 0
    %220 = vmatprep.subr.bf16.mxu0 0
    %221 = vmatpush2.bf16.msra.mxu0 0
    %222 = vmatprep.subr.bf16.mxu0 0
    %223 = vmatpush2.bf16.msra.mxu0 0
    %224 = vmatprep.subr.bf16.mxu0 0
    %225 = vmatpush2.bf16.msra.mxu0 0
    %226 = vmatprep.subr.bf16.mxu0 0
    %227 = vmatpush2.bf16.msra.mxu0 0
    %228 = vmatprep.mubr.bf16.mxu0 0
    %229 = vmatmul.mubr.bf16.gmra.mxu0 %v114
    %v230 = vpop.f32.mrf.mxu0
    %v231 = vadd.f32 0.0, %v230
    %v232 = vpop.f32.mrf.mxu0
    %v233 = vadd.f32 0.0, %v232
    %v234 = vpop.f32.mrf.mxu0
    %v235 = vadd.f32 0.0, %v234
    %v236 = vpop.f32.mrf.mxu0
    %v237 = vadd.f32 0.0, %v236
    %238 = vdwg.mxu0
    %v241 = vunpack.c.l.b16 %v74
    %v242 = vunpack.c.l.b16 %v75
    %v243 = vpack.c.b16 %v242, %v241
    %v261 = vunpack.c.l.b16 %v78
    %v262 = vunpack.c.h.b16 %v78
    %v263 = vunpack.c.l.b16 %v79
    %v264 = vunpack.c.h.b16 %v79
    %v265 = vunpack.c.l.b16 %v80
    %v266 = vunpack.c.h.b16 %v80
    %v267 = vunpack.c.l.b16 %v81
    %v268 = vunpack.c.h.b16 %v81
    %v269 = vunpack.c.l.b16 %v82
    %v270 = vunpack.c.h.b16 %v82
    %v271 = vunpack.c.l.b16 %v83
    %v272 = vunpack.c.h.b16 %v83
    %v273 = vunpack.c.l.b16 %v84
    %v274 = vunpack.c.h.b16 %v84
    %v275 = vunpack.c.l.b16 %v85
    %v276 = vunpack.c.h.b16 %v85
    %v277 = vunpack.c.l.b16 %v86
    %v278 = vunpack.c.h.b16 %v86
    %v279 = vunpack.c.l.b16 %v87
    %v280 = vunpack.c.h.b16 %v87
    %v281 = vunpack.c.l.b16 %v88
    %v282 = vunpack.c.h.b16 %v88
    %v283 = vunpack.c.l.b16 %v89
    %v284 = vunpack.c.h.b16 %v89
    %v285 = vunpack.c.l.b16 %v90
    %v286 = vunpack.c.h.b16 %v90
    %v287 = vunpack.c.l.b16 %v91
    %v288 = vunpack.c.h.b16 %v91
    %v289 = vunpack.c.l.b16 %v92
    %v290 = vunpack.c.h.b16 %v92
    %v291 = vunpack.c.l.b16 %v93
    %v292 = vunpack.c.h.b16 %v93
    %v293 = vpack.c.b16 %v263, %v261
    %v294 = vpack.c.b16 %v264, %v262
    %v295 = vpack.c.b16 %v267, %v265
    %v296 = vpack.c.b16 %v268, %v266
    %v297 = vpack.c.b16 %v271, %v269
    %v298 = vpack.c.b16 %v272, %v270
    %v299 = vpack.c.b16 %v275, %v273
    %v300 = vpack.c.b16 %v276, %v274
    %v301 = vpack.c.b16 %v279, %v277
    %v302 = vpack.c.b16 %v280, %v278
    %v303 = vpack.c.b16 %v283, %v281
    %v304 = vpack.c.b16 %v284, %v282
    %v305 = vpack.c.b16 %v287, %v285
    %v306 = vpack.c.b16 %v288, %v286
    %v307 = vpack.c.b16 %v291, %v289
    %v308 = vpack.c.b16 %v292, %v290
    %325 = vmatprep.subr.bf16.mxu0 %v308
    %326 = vmatpush1.bf16.msra.mxu0 %v307
    %327 = vmatprep.subr.bf16.mxu0 %v306
    %328 = vmatpush1.bf16.msra.mxu0 %v305
    %329 = vmatprep.subr.bf16.mxu0 %v304
    %330 = vmatpush1.bf16.msra.mxu0 %v303
    %331 = vmatprep.subr.bf16.mxu0 %v302
    %332 = vmatpush1.bf16.msra.mxu0 %v301
    %333 = vmatprep.subr.bf16.mxu0 %v300
    %334 = vmatpush1.bf16.msra.mxu0 %v299
    %335 = vmatprep.subr.bf16.mxu0 %v298
    %336 = vmatpush1.bf16.msra.mxu0 %v297
    %337 = vmatprep.subr.bf16.mxu0 %v296
    %338 = vmatpush1.bf16.msra.mxu0 %v295
    %339 = vmatprep.subr.bf16.mxu0 %v294
    %340 = vmatpush1.bf16.msra.mxu0 %v293
    %341 = vmatprep.subr.bf16.mxu0 0
    %342 = vmatpush2.bf16.msra.mxu0 0
    %343 = vmatprep.subr.bf16.mxu0 0
    %344 = vmatpush2.bf16.msra.mxu0 0
    %345 = vmatprep.subr.bf16.mxu0 0
    %346 = vmatpush2.bf16.msra.mxu0 0
    %347 = vmatprep.subr.bf16.mxu0 0
    %348 = vmatpush2.bf16.msra.mxu0 0
    %349 = vmatprep.subr.bf16.mxu0 0
    %350 = vmatpush2.bf16.msra.mxu0 0
    %351 = vmatprep.subr.bf16.mxu0 0
    %352 = vmatpush2.bf16.msra.mxu0 0
    %353 = vmatprep.subr.bf16.mxu0 0
    %354 = vmatpush2.bf16.msra.mxu0 0
    %355 = vmatprep.subr.bf16.mxu0 0
    %356 = vmatpush2.bf16.msra.mxu0 0
    %357 = vmatprep.mubr.bf16.mxu0 0
    %358 = vmatmul.mubr.bf16.gmra.mxu0 %v243
    %v359 = vpop.f32.mrf.mxu0
    %v360 = vadd.f32 %v231, %v359
    %v361 = vpop.f32.mrf.mxu0
    %v362 = vadd.f32 %v233, %v361
    %v363 = vpop.f32.mrf.mxu0
    %v364 = vadd.f32 %v235, %v363
    %v365 = vpop.f32.mrf.mxu0
    %v366 = vadd.f32 %v237, %v365
    %367 = vdwg.mxu0
    %v368 = vld [vmem:[%s4] sm:$0x3]
    %v370 = vlaneseq
    %v371 = vshrl.u32 %v370, 7
    %v372 = vsub.s32 0, %v371
    %v373 = vrot.slane %v368, %v372
    %v374 = vlaneseq
    %v375 = vshrl.u32 %v374, 7
    %v376 = vsub.s32 1, %v375
    %v377 = vrot.slane %v368, %v376
    %v380 = vadd.f32 %v360, %v373
    %v381 = vadd.f32 %v362, %v377
    %v382 = vadd.f32 %v364, %v373
    %v383 = vadd.f32 %v366, %v377
    %v384 = vmax.f32 %v380, 0.0
    %v385 = vmax.f32 %v381, 0.0
    %v386 = vmax.f32 %v382, 0.0
    %v387 = vmax.f32 %v383, 0.0
    %v388 = vpack.c.bf16 %v386, %v384
    %v389 = vpack.c.bf16 %v387, %v385
    %v390 = vld [vmem:[#allocation6] sm:$0xff]
    %v391 = vld [vmem:[#allocation6 + $0x8] sm:$0xff]
    %v392 = vld [vmem:[#allocation6 + $0x10] sm:$0xff]
    %v393 = vld [vmem:[#allocation6 + $0x18] sm:$0xff]
    %v394 = vld [vmem:[#allocation6 + $0x20] sm:$0xff]
    %v395 = vld [vmem:[#allocation6 + $0x28] sm:$0xff]
    %v396 = vld [vmem:[#allocation6 + $0x30] sm:$0xff]
    %v397 = vld [vmem:[#allocation6 + $0x38] sm:$0xff]
    %v398 = vld [vmem:[#allocation6 + $0x40] sm:$0xff]
    %v399 = vld [vmem:[#allocation6 + $0x48] sm:$0xff]
    %v400 = vld [vmem:[#allocation6 + $0x50] sm:$0xff]
    %v401 = vld [vmem:[#allocation6 + $0x58] sm:$0xff]
    %v402 = vld [vmem:[#allocation6 + $0x60] sm:$0xff]
    %v403 = vld [vmem:[#allocation6 + $0x68] sm:$0xff]
    %v404 = vld [vmem:[#allocation6 + $0x70] sm:$0xff]
    %v405 = vld [vmem:[#allocation6 + $0x78] sm:$0xff]
    %v406 = vld [vmem:[#allocation6 + $0x80] sm:$0xff]
    %v407 = vld [vmem:[#allocation6 + $0x88] sm:$0xff]
    %v408 = vld [vmem:[#allocation6 + $0x90] sm:$0xff]
    %v409 = vld [vmem:[#allocation6 + $0x98] sm:$0xff]
    %v410 = vld [vmem:[#allocation6 + $0xa0] sm:$0xff]
    %v411 = vld [vmem:[#allocation6 + $0xa8] sm:$0xff]
    %v412 = vld [vmem:[#allocation6 + $0xb0] sm:$0xff]
    %v413 = vld [vmem:[#allocation6 + $0xb8] sm:$0xff]
    %v414 = vld [vmem:[#allocation6 + $0xc0] sm:$0xff]
    %v415 = vld [vmem:[#allocation6 + $0xc8] sm:$0xff]
    %v416 = vld [vmem:[#allocation6 + $0xd0] sm:$0xff]
    %v417 = vld [vmem:[#allocation6 + $0xd8] sm:$0xff]
    %v418 = vld [vmem:[#allocation6 + $0xe0] sm:$0xff]
    %v419 = vld [vmem:[#allocation6 + $0xe8] sm:$0xff]
    %v420 = vld [vmem:[#allocation6 + $0xf0] sm:$0xff]
    %v421 = vld [vmem:[#allocation6 + $0xf8] sm:$0xff]
    %v422 = vld [vmem:[%s6] sm:$0x3]
    %v424 = vlaneseq
    %v425 = vshrl.u32 %v424, 7
    %v426 = vsub.s32 0, %v425
    %v427 = vrot.slane %v422, %v426
    %v428 = vlaneseq
    %v429 = vshrl.u32 %v428, 7
    %v430 = vsub.s32 1, %v429
    %v431 = vrot.slane %v422, %v430
    %v466 = vunpack.c.l.b16 %v390
    %v467 = vunpack.c.h.b16 %v390
    %v468 = vunpack.c.l.b16 %v391
    %v469 = vunpack.c.h.b16 %v391
    %v470 = vunpack.c.l.b16 %v392
    %v471 = vunpack.c.h.b16 %v392
    %v472 = vunpack.c.l.b16 %v393
    %v473 = vunpack.c.h.b16 %v393
    %v474 = vunpack.c.l.b16 %v394
    %v475 = vunpack.c.h.b16 %v394
    %v476 = vunpack.c.l.b16 %v395
    %v477 = vunpack.c.h.b16 %v395
    %v478 = vunpack.c.l.b16 %v396
    %v479 = vunpack.c.h.b16 %v396
    %v480 = vunpack.c.l.b16 %v397
    %v481 = vunpack.c.h.b16 %v397
    %v482 = vunpack.c.l.b16 %v398
    %v483 = vunpack.c.h.b16 %v398
    %v484 = vunpack.c.l.b16 %v399
    %v485 = vunpack.c.h.b16 %v399
    %v486 = vunpack.c.l.b16 %v400
    %v487 = vunpack.c.h.b16 %v400
    %v488 = vunpack.c.l.b16 %v401
    %v489 = vunpack.c.h.b16 %v401
    %v490 = vunpack.c.l.b16 %v402
    %v491 = vunpack.c.h.b16 %v402
    %v492 = vunpack.c.l.b16 %v403
    %v493 = vunpack.c.h.b16 %v403
    %v494 = vunpack.c.l.b16 %v404
    %v495 = vunpack.c.h.b16 %v404
    %v496 = vunpack.c.l.b16 %v405
    %v497 = vunpack.c.h.b16 %v405
    %v498 = vunpack.c.l.b16 %v406
    %v499 = vunpack.c.h.b16 %v406
    %v500 = vunpack.c.l.b16 %v407
    %v501 = vunpack.c.h.b16 %v407
    %v502 = vunpack.c.l.b16 %v408
    %v503 = vunpack.c.h.b16 %v408
    %v504 = vunpack.c.l.b16 %v409
    %v505 = vunpack.c.h.b16 %v409
    %v506 = vunpack.c.l.b16 %v410
    %v507 = vunpack.c.h.b16 %v410
    %v508 = vunpack.c.l.b16 %v411
    %v509 = vunpack.c.h.b16 %v411
    %v510 = vunpack.c.l.b16 %v412
    %v511 = vunpack.c.h.b16 %v412
    %v512 = vunpack.c.l.b16 %v413
    %v513 = vunpack.c.h.b16 %v413
    %v514 = vunpack.c.l.b16 %v414
    %v515 = vunpack.c.h.b16 %v414
    %v516 = vunpack.c.l.b16 %v415
    %v517 = vunpack.c.h.b16 %v415
    %v518 = vunpack.c.l.b16 %v416
    %v519 = vunpack.c.h.b16 %v416
    %v520 = vunpack.c.l.b16 %v417
    %v521 = vunpack.c.h.b16 %v417
    %v522 = vunpack.c.l.b16 %v418
    %v523 = vunpack.c.h.b16 %v418
    %v524 = vunpack.c.l.b16 %v419
    %v525 = vunpack.c.h.b16 %v419
    %v526 = vunpack.c.l.b16 %v420
    %v527 = vunpack.c.h.b16 %v420
    %v528 = vunpack.c.l.b16 %v421
    %v529 = vunpack.c.h.b16 %v421
    %v530 = vpack.c.b16 %v468, %v466
    %v531 = vpack.c.b16 %v469, %v467
    %v532 = vpack.c.b16 %v472, %v470
    %v533 = vpack.c.b16 %v473, %v471
    %v534 = vpack.c.b16 %v476, %v474
    %v535 = vpack.c.b16 %v477, %v475
    %v536 = vpack.c.b16 %v480, %v478
    %v537 = vpack.c.b16 %v481, %v479
    %v538 = vpack.c.b16 %v484, %v482
    %v539 = vpack.c.b16 %v485, %v483
    %v540 = vpack.c.b16 %v488, %v486
    %v541 = vpack.c.b16 %v489, %v487
    %v542 = vpack.c.b16 %v492, %v490
    %v543 = vpack.c.b16 %v493, %v491
    %v544 = vpack.c.b16 %v496, %v494
    %v545 = vpack.c.b16 %v497, %v495
    %v546 = vpack.c.b16 %v500, %v498
    %v547 = vpack.c.b16 %v501, %v499
    %v548 = vpack.c.b16 %v504, %v502
    %v549 = vpack.c.b16 %v505, %v503
    %v550 = vpack.c.b16 %v508, %v506
    %v551 = vpack.c.b16 %v509, %v507
    %v552 = vpack.c.b16 %v512, %v510
    %v553 = vpack.c.b16 %v513, %v511
    %v554 = vpack.c.b16 %v516, %v514
    %v555 = vpack.c.b16 %v517, %v515
    %v556 = vpack.c.b16 %v520, %v518
    %v557 = vpack.c.b16 %v521, %v519
    %v558 = vpack.c.b16 %v524, %v522
    %v559 = vpack.c.b16 %v525, %v523
    %v560 = vpack.c.b16 %v528, %v526
    %v561 = vpack.c.b16 %v529, %v527
    %594 = vmatprep.subr.bf16.mxu0 %v545
    %595 = vmatpush1.bf16.msra.mxu0 %v544
    %596 = vmatprep.subr.bf16.mxu0 %v543
    %597 = vmatpush1.bf16.msra.mxu0 %v542
    %598 = vmatprep.subr.bf16.mxu0 %v541
    %599 = vmatpush1.bf16.msra.mxu0 %v540
    %600 = vmatprep.subr.bf16.mxu0 %v539
    %601 = vmatpush1.bf16.msra.mxu0 %v538
    %602 = vmatprep.subr.bf16.mxu0 %v537
    %603 = vmatpush1.bf16.msra.mxu0 %v536
    %604 = vmatprep.subr.bf16.mxu0 %v535
    %605 = vmatpush1.bf16.msra.mxu0 %v534
    %606 = vmatprep.subr.bf16.mxu0 %v533
    %607 = vmatpush1.bf16.msra.mxu0 %v532
    %608 = vmatprep.subr.bf16.mxu0 %v531
    %609 = vmatpush1.bf16.msra.mxu0 %v530
    %610 = vmatprep.subr.bf16.mxu0 %v561
    %611 = vmatpush2.bf16.msra.mxu0 %v560
    %612 = vmatprep.subr.bf16.mxu0 %v559
    %613 = vmatpush2.bf16.msra.mxu0 %v558
    %614 = vmatprep.subr.bf16.mxu0 %v557
    %615 = vmatpush2.bf16.msra.mxu0 %v556
    %616 = vmatprep.subr.bf16.mxu0 %v555
    %617 = vmatpush2.bf16.msra.mxu0 %v554
    %618 = vmatprep.subr.bf16.mxu0 %v553
    %619 = vmatpush2.bf16.msra.mxu0 %v552
    %620 = vmatprep.subr.bf16.mxu0 %v551
    %621 = vmatpush2.bf16.msra.mxu0 %v550
    %622 = vmatprep.subr.bf16.mxu0 %v549
    %623 = vmatpush2.bf16.msra.mxu0 %v548
    %624 = vmatprep.subr.bf16.mxu0 %v547
    %625 = vmatpush2.bf16.msra.mxu0 %v546
    %626 = vmatprep.mubr.bf16.mxu0 %v389
    %627 = vmatmul.mubr.bf16.gmra.mxu0 %v388
    %v628 = vpop.f32.mrf.mxu0
    %v629 = vadd.f32 %v427, %v628
    %v630 = vpop.f32.mrf.mxu0
    %v631 = vadd.f32 %v431, %v630
    %v632 = vpop.f32.mrf.mxu0
    %v633 = vadd.f32 %v427, %v632
    %v634 = vpop.f32.mrf.mxu0
    %v635 = vadd.f32 %v431, %v634
    %636 = vdwg.mxu0
    %v637 = vmax.f32 %v629, 0.0
    %v638 = vmax.f32 %v631, 0.0
    %v639 = vmax.f32 %v633, 0.0
    %v640 = vmax.f32 %v635, 0.0
    %v641 = vpack.c.bf16 %v639, %v637
    %v642 = vpack.c.bf16 %v640, %v638
    %v643 = vld [vmem:[%s7] sm:$0xf]
    %v644 = vld [vmem:[%s7 + $0x4] sm:$0xf]
    %v645 = vld [vmem:[%s7 + $0x8] sm:$0xf]
    %v646 = vld [vmem:[%s7 + $0xc] sm:$0xf]
    %v647 = vld [vmem:[%s7 + $0x10] sm:$0xf]
    %v648 = vld [vmem:[%s7 + $0x14] sm:$0xf]
    %v649 = vld [vmem:[%s7 + $0x18] sm:$0xf]
    %v650 = vld [vmem:[%s7 + $0x1c] sm:$0xf]
    %v651 = vld [vmem:[%s7 + $0x20] sm:$0xf]
    %v652 = vld [vmem:[%s7 + $0x24] sm:$0xf]
    %v653 = vld [vmem:[%s7 + $0x28] sm:$0xf]
    %v654 = vld [vmem:[%s7 + $0x2c] sm:$0xf]
    %v655 = vld [vmem:[%s7 + $0x30] sm:$0xf]
    %v656 = vld [vmem:[%s7 + $0x34] sm:$0xf]
    %v657 = vld [vmem:[%s7 + $0x38] sm:$0xf]
    %v658 = vld [vmem:[%s7 + $0x3c] sm:$0xf]
    %v659 = vld [vmem:[%s7 + $0x40] sm:$0xf]
    %v660 = vld [vmem:[%s7 + $0x44] sm:$0xf]
    %v661 = vld [vmem:[%s7 + $0x48] sm:$0xf]
    %v662 = vld [vmem:[%s7 + $0x4c] sm:$0xf]
    %v663 = vld [vmem:[%s7 + $0x50] sm:$0xf]
    %v664 = vld [vmem:[%s7 + $0x54] sm:$0xf]
    %v665 = vld [vmem:[%s7 + $0x58] sm:$0xf]
    %v666 = vld [vmem:[%s7 + $0x5c] sm:$0xf]
    %v667 = vld [vmem:[%s7 + $0x60] sm:$0xf]
    %v668 = vld [vmem:[%s7 + $0x64] sm:$0xf]
    %v669 = vld [vmem:[%s7 + $0x68] sm:$0xf]
    %v670 = vld [vmem:[%s7 + $0x6c] sm:$0xf]
    %v671 = vld [vmem:[%s7 + $0x70] sm:$0xf]
    %v672 = vld [vmem:[%s7 + $0x74] sm:$0xf]
    %v673 = vld [vmem:[%s7 + $0x78] sm:$0xf]
    %v674 = vld [vmem:[%s7 + $0x7c] sm:$0xf]
    %v675 = vld [vmem:[%s8] sm:$0x1]
    %v677 = vlaneseq
    %v678 = vshrl.u32 %v677, 7
    %v679 = vsub.s32 0, %v678
    %v680 = vrot.slane %v675, %v679
    %v714 = vunpack.c.l.b16 %v643
    %v715 = vunpack.c.l.b16 %v644
    %v716 = vunpack.c.l.b16 %v645
    %v717 = vunpack.c.l.b16 %v646
    %v718 = vunpack.c.l.b16 %v647
    %v719 = vunpack.c.l.b16 %v648
    %v720 = vunpack.c.l.b16 %v649
    %v721 = vunpack.c.l.b16 %v650
    %v722 = vunpack.c.l.b16 %v651
    %v723 = vunpack.c.l.b16 %v652
    %v724 = vunpack.c.l.b16 %v653
    %v725 = vunpack.c.l.b16 %v654
    %v726 = vunpack.c.l.b16 %v655
    %v727 = vunpack.c.l.b16 %v656
    %v728 = vunpack.c.l.b16 %v657
    %v729 = vunpack.c.l.b16 %v658
    %v730 = vunpack.c.l.b16 %v659
    %v731 = vunpack.c.l.b16 %v660
    %v732 = vunpack.c.l.b16 %v661
    %v733 = vunpack.c.l.b16 %v662
    %v734 = vunpack.c.l.b16 %v663
    %v735 = vunpack.c.l.b16 %v664
    %v736 = vunpack.c.l.b16 %v665
    %v737 = vunpack.c.l.b16 %v666
    %v738 = vunpack.c.l.b16 %v667
    %v739 = vunpack.c.l.b16 %v668
    %v740 = vunpack.c.l.b16 %v669
    %v741 = vunpack.c.l.b16 %v670
    %v742 = vunpack.c.l.b16 %v671
    %v743 = vunpack.c.l.b16 %v672
    %v744 = vunpack.c.l.b16 %v673
    %v745 = vunpack.c.l.b16 %v674
    %v746 = vpack.c.b16 %v715, %v714
    %v747 = vpack.c.b16 %v717, %v716
    %v748 = vpack.c.b16 %v719, %v718
    %v749 = vpack.c.b16 %v721, %v720
    %v750 = vpack.c.b16 %v723, %v722
    %v751 = vpack.c.b16 %v725, %v724
    %v752 = vpack.c.b16 %v727, %v726
    %v753 = vpack.c.b16 %v729, %v728
    %v754 = vpack.c.b16 %v731, %v730
    %v755 = vpack.c.b16 %v733, %v732
    %v756 = vpack.c.b16 %v735, %v734
    %v757 = vpack.c.b16 %v737, %v736
    %v758 = vpack.c.b16 %v739, %v738
    %v759 = vpack.c.b16 %v741, %v740
    %v760 = vpack.c.b16 %v743, %v742
    %v761 = vpack.c.b16 %v745, %v744
    %778 = vmatprep.subr.bf16.mxu0 0
    %779 = vmatpush1.bf16.msra.mxu0 %v753
    %780 = vmatprep.subr.bf16.mxu0 0
    %781 = vmatpush1.bf16.msra.mxu0 %v752
    %782 = vmatprep.subr.bf16.mxu0 0
    %783 = vmatpush1.bf16.msra.mxu0 %v751
    %784 = vmatprep.subr.bf16.mxu0 0
    %785 = vmatpush1.bf16.msra.mxu0 %v750
    %786 = vmatprep.subr.bf16.mxu0 0
    %787 = vmatpush1.bf16.msra.mxu0 %v749
    %788 = vmatprep.subr.bf16.mxu0 0
    %789 = vmatpush1.bf16.msra.mxu0 %v748
    %790 = vmatprep.subr.bf16.mxu0 0
    %791 = vmatpush1.bf16.msra.mxu0 %v747
    %792 = vmatprep.subr.bf16.mxu0 0
    %793 = vmatpush1.bf16.msra.mxu0 %v746
    %794 = vmatprep.subr.bf16.mxu0 0
    %795 = vmatpush2.bf16.msra.mxu0 %v761
    %796 = vmatprep.subr.bf16.mxu0 0
    %797 = vmatpush2.bf16.msra.mxu0 %v760
    %798 = vmatprep.subr.bf16.mxu0 0
    %799 = vmatpush2.bf16.msra.mxu0 %v759
    %800 = vmatprep.subr.bf16.mxu0 0
    %801 = vmatpush2.bf16.msra.mxu0 %v758
    %802 = vmatprep.subr.bf16.mxu0 0
    %803 = vmatpush2.bf16.msra.mxu0 %v757
    %804 = vmatprep.subr.bf16.mxu0 0
    %805 = vmatpush2.bf16.msra.mxu0 %v756
    %806 = vmatprep.subr.bf16.mxu0 0
    %807 = vmatpush2.bf16.msra.mxu0 %v755
    %808 = vmatprep.subr.bf16.mxu0 0
    %809 = vmatpush2.bf16.msra.mxu0 %v754
    %810 = vmatprep.mubr.bf16.mxu0 %v642
    %811 = vmatmul.mubr.bf16.gmra.mxu0 %v641
    %v812 = vpop.f32.mrf.mxu0
    %v813 = vadd.f32 %v680, %v812
    %v814 = vpop.f32.mrf.mxu0
    %v815 = vpop.f32.mrf.mxu0
    %v816 = vadd.f32 %v680, %v815
    %v817 = vpop.f32.mrf.mxu0
    %818 = vdwg.mxu0
    %v819 = vand.u32 2147483647, %v813
    %v820 = vand.u32 2147483647, %v816
    %v821 = vsub.f32 0.0, %v819
    %v822 = vsub.f32 0.0, %v820
    %v823 = vmul.f32 %v821, 1.442695
    %v824 = vpow.pop %v823
    %v825 = vmul.f32 %v822, 1.442695
    %v826 = vpow.pop %v825
    %vm827 = vcmp.ge.f32.partialorder %v813, 0.0
    %vm828 = vcmp.ge.f32.partialorder %v816, 0.0
    %v829 = vsel %vm827, 1.0, %v824
    %v830 = vsel %vm828, 1.0, %v826
    %v831 = vadd.f32 %v824, 1.0
    %v832 = vadd.f32 %v826, 1.0
    %v833 = vrcp.pop %v831
    %v834 = vmul.f32 %v829, %v833
    %v835 = vrcp.pop %v832
    %v836 = vmul.f32 %v830, %v835
    %vm837 = vcmask 64512
    %838 = vst.msk [vmem:[%s9] sm:$0xff] %vm837, %v834
    %839 = vst.msk [vmem:[%s9 + $0x8] sm:$0xff] %vm837, %v836
    // Predicated region
    $region50: #{tpu_custom_call.1} parent=1 // pred_check
      _
    $region51: #{tpu_custom_call.1} parent=1 // pred_check_branch
      %841 = sbr.rel (0) target = $region53
    $region52: #{tpu_custom_call.1} parent=1 // pred_region
      _
    $region53: #{tpu_custom_call.1} parent=1 // pred_fallthru
      _
    // Predicated region
    $region54: #{tpu_custom_call.1} parent=1 // pred_check
      _
    $region55: #{tpu_custom_call.1} parent=1 // pred_check_branch
      %843 = sbr.rel (0) target = $region57
    $region56: #{tpu_custom_call.1} parent=1 // pred_region
      _
    $region57: #{tpu_custom_call.1} parent=1 // pred_fallthru
      _
    %844 = vsyncpa [#allocation3], 1
    %845 = vsyncpa [#allocation5], 1

</llo_original>
